<compile_context>
chip_gen: v7x
topology: tpu7x:2x2x1
jax: 0.10.0
libtpu: 0.0.40
codegen_flags: <defaults>
</compile_context>

<pallas_src>
import jax
import jax.numpy as jnp
from jax.experimental import pallas as pl
from jax.experimental.pallas import tpu as pltpu

BN_EPS = 1e-5
LANE = 128
MAX_TILE_ROWS = 512      # v6e mem-bound sweep: 512-row tiles ~85% of HBM roofline


def _round_up(v, m):
    return (v + m - 1) // m * m


# --------------- phase 1: h = x @ W1 (bf16 MXU, f32 acc) + per-core BN stats ---------------
def _phase1_kernel(x_ref, w1_ref, h_ref, sum_ref, sumsq_ref):
    # Zero this core's stat accumulators at the start of its batch-tile loop.
    @pl.when(pl.program_id(1) == 0)
    def _():
        sum_ref[...] = jnp.zeros_like(sum_ref)
        sumsq_ref[...] = jnp.zeros_like(sumsq_ref)

    # f32 HBM read, cast to bf16 under the MXU (free VPU slot).  The first Linear's
    # bias is intentionally omitted: a constant per-feature shift added right before
    # training-mode BatchNorm is cancelled exactly by the batch-mean subtraction.
    x = x_ref[...].astype(jnp.bfloat16)
    h = jnp.dot(x, w1_ref[...], preferred_element_type=jnp.float32)

    # Store pre-BN activations in bf16 (halves the dominant HBM round trip); keep
    # the statistics in f32 from the unrounded h so BN precision is unchanged.
    h_ref[...] = h.astype(jnp.bfloat16)
    sum_ref[...] += jnp.sum(h, axis=0, keepdims=True)[None]
    sumsq_ref[...] += jnp.sum(h * h, axis=0, keepdims=True)[None]


# --------------- phase 2: fused BN scale/shift + ReLU + second matmul ---------------
def _phase2_kernel(h_ref, scale_ref, shift_ref, w2_ref, b2_ref, o_ref):
    h = h_ref[...].astype(jnp.float32) * scale_ref[...] + shift_ref[...]   # BN (f32 VPU)
    h = jnp.maximum(h, 0.0)                                                # ReLU
    o = jnp.dot(h.astype(jnp.bfloat16), w2_ref[...],
                preferred_element_type=jnp.float32) + b2_ref[...]
    o_ref[...] = o.astype(o_ref.dtype)


def init_mlp_params(w1, b1, gamma, beta, w2, b2):
    """Pad/cast the parameters once (hoisted off the per-forward path).

    b1 is accepted for API parity with nn.Linear(in, hidden) but is unused: a bias
    added immediately before training-mode BatchNorm is cancelled by the batch-mean
    subtraction.  (If this module were ever evaluated with running statistics, b1
    would have to be re-introduced.)
    """
    del b1
    d_in, hidden = w1.shape
    d_out = w2.shape[1]
    d_in_p = _round_up(d_in, LANE)
    h_p = _round_up(hidden, LANE)
    d_out_p = _round_up(d_out, LANE)
    return dict(
        d_in=d_in, hidden=hidden, d_out=d_out,
        d_in_p=d_in_p, h_p=h_p, d_out_p=d_out_p,
        w1=jnp.pad(w1, ((0, d_in_p - d_in), (0, h_p - hidden))).astype(jnp.bfloat16),
        w2=jnp.pad(w2, ((0, h_p - hidden), (0, d_out_p - d_out))).astype(jnp.bfloat16),
        gamma=jnp.pad(gamma, ((0, 0), (0, h_p - hidden)), constant_values=1.0),
        beta=jnp.pad(beta, ((0, 0), (0, h_p - hidden))),
        b2=jnp.pad(b2, ((0, 0), (0, d_out_p - d_out))),
    )


def _batch_tiling(B):
    """Near-equal batch tiles (<= MAX_TILE_ROWS rows, multiples of 16); tile count
    made even when possible so the leading 'parallel' core axis can shard across
    the two v7x TensorCores."""
    n_tiles = pl.cdiv(B, MAX_TILE_ROWS)
    if n_tiles > 1 and n_tiles % 2:
        n_tiles += 1
    tb = _round_up(pl.cdiv(B, n_tiles), 16)
    b_pad = n_tiles * tb
    n_core = 2 if n_tiles % 2 == 0 else 1
    return tb, b_pad, n_core, n_tiles // n_core


def _vmem_limit(pipelined_tile_bytes, resident_bytes):
    # Pipelined tiles are double-buffered; conservatively assume residents may also
    # get two buffers.  Clamp so the request stays within v7x's 64 MiB VMEM while
    # still allowing large tiles on v5e/v6e (128 MiB physical).
    need = 2 * pipelined_tile_bytes + 2 * resident_bytes
    need = int(need * 1.25) + (1 << 20)
    return max(32 << 20, min(need, 60 << 20))


def mlp_forward(x, params):
    """_MLP forward.  x: (B, in_features) f32 -> (B, out_features) f32."""
    B, d_in = x.shape
    assert d_in == params["d_in"]
    d_in_p, h_p, d_out_p = params["d_in_p"], params["h_p"], params["d_out_p"]
    w1, w2 = params["w1"], params["w2"]
    gamma, beta, b2 = params["gamma"], params["beta"], params["b2"]

    tb, b_pad, n_core, tiles_per_core = _batch_tiling(B)
    n_tiles = n_core * tiles_per_core

    # x stays f32 (cast to bf16 in-kernel); pad only when needed.  Padded batch rows
    # are zero and the stats are divided by the *true* batch size B, so padding
    # never perturbs the BatchNorm math.
    if b_pad != B or d_in_p != d_in:
        xp = jnp.pad(x, ((0, b_pad - B), (0, d_in_p - d_in)))
    else:
        xp = x

    # ---------------- phase 1: matmul + per-core full-batch stats ----------------
    p1_tiles = tb * d_in_p * 4 + tb * h_p * 2                 # x-in (f32) + h-out (bf16)
    p1_resident = d_in_p * h_p * 2 + 2 * n_core * h_p * 4     # W1 + stat slabs
    h_act, psum, psumsq = pl.pallas_call(
        _phase1_kernel,
        out_shape=(
            jax.ShapeDtypeStruct((b_pad, h_p), jnp.bfloat16),     # pre-BN activations
            jax.ShapeDtypeStruct((n_core, 1, h_p), jnp.float32),  # per-core sum
            jax.ShapeDtypeStruct((n_core, 1, h_p), jnp.float32),  # per-core sum(h^2)
        ),
        grid=(n_core, tiles_per_core),
        in_specs=[
            pl.BlockSpec((tb, d_in_p), lambda c, i: (c * tiles_per_core + i, 0)),
            pl.BlockSpec((d_in_p, h_p), lambda c, i: (0, 0)),     # W1 VMEM-resident
        ],
        out_specs=(
            pl.BlockSpec((tb, h_p), lambda c, i: (c * tiles_per_core + i, 0)),
            pl.BlockSpec((1, 1, h_p), lambda c, i: (c, 0, 0)),    # per-core partials
            pl.BlockSpec((1, 1, h_p), lambda c, i: (c, 0, 0)),
        ),
        compiler_params=pltpu.CompilerParams(
            dimension_semantics=("parallel", "arbitrary"),   # core axis shardable (v7x)
            vmem_limit_bytes=_vmem_limit(p1_tiles, p1_resident)),
    )(xp, w1)

    # -------- tiny XLA glue: reduce partials, fused BN scale/shift, (1, h_p) --------
    inv_b = jnp.float32(1.0 / B)
    mean = jnp.sum(psum, axis=0) * inv_b                              # (1, h_p)
    var = jnp.maximum(jnp.sum(psumsq, axis=0) * inv_b - mean * mean, 0.0)  # biased var
    scale = gamma * jax.lax.rsqrt(var + BN_EPS)
    shift = beta - mean * scale

    # ---------------- phase 2: normalize + ReLU + second matmul ----------------
    p2_tiles = tb * h_p * 2 + tb * d_out_p * 4                # h-in (bf16) + out (f32)
    p2_resident = h_p * d_out_p * 2 + 2 * h_p * 4 + d_out_p * 4
    out_p = pl.pallas_call(
        _phase2_kernel,
        out_shape=jax.ShapeDtypeStruct((b_pad, d_out_p), x.dtype),
        grid=(n_tiles,),
        in_specs=[
            pl.BlockSpec((tb, h_p), lambda i: (i, 0)),
            pl.BlockSpec((1, h_p), lambda i: (0, 0)),          # scale (resident)
            pl.BlockSpec((1, h_p), lambda i: (0, 0)),          # shift (resident)
            pl.BlockSpec((h_p, d_out_p), lambda i: (0, 0)),    # W2   (resident)
            pl.BlockSpec((1, d_out_p), lambda i: (0, 0)),      # b2   (resident)
        ],
        out_specs=pl.BlockSpec((tb, d_out_p), lambda i: (i, 0)),
        compiler_params=pltpu.CompilerParams(
            dimension_semantics=("parallel",),                 # independent batch tiles
            vmem_limit_bytes=_vmem_limit(p2_tiles, p2_resident)),
    )(h_act, scale, shift, w2, b2)

    return out_p[:B, :params["d_out"]]


def _reference(x, w1, b1, gamma, beta, w2, b2):
    """Faithful training-mode forward; bf16 matmul operands mirror the kernel's MXU
    precision, BN/ReLU math stays in f32."""
    h = jnp.dot(x.astype(jnp.bfloat16), w1.astype(jnp.bfloat16),
                preferred_element_type=jnp.float32) + b1
    mean = jnp.mean(h, axis=0, keepdims=True)
    var = jnp.mean((h - mean) ** 2, axis=0, keepdims=True)     # biased variance
    h = (h - mean) * jax.lax.rsqrt(var + BN_EPS)
    h = h * gamma + beta
    h = jnp.maximum(h, 0.0)
    return jnp.dot(h.astype(jnp.bfloat16), w2.astype(jnp.bfloat16),
                   preferred_element_type=jnp.float32) + b2


if __name__ == "__main__":
    # Deterministic synthetic parameters (no checkpoint loading).
    in_features, hidden_size, out_features = 16, 32, 16
    batch = 8

    key = jax.random.PRNGKey(0)
    kx, k1, kb1, k2, kb2 = jax.random.split(key, 5)

    x = jax.random.normal(kx, (batch, in_features), dtype=jnp.float32)

    # Linear weights stored as (in, out); PyTorch-like uniform init scale.
    lim1 = 1.0 / jnp.sqrt(in_features)
    w1 = jax.random.uniform(k1, (in_features, hidden_size), minval=-lim1, maxval=lim1,
                            dtype=jnp.float32)
    b1 = jax.random.uniform(kb1, (1, hidden_size), minval=-lim1, maxval=lim1,
                            dtype=jnp.float32)

    # BatchNorm1d affine params at their PyTorch init values.
    gamma = jnp.ones((1, hidden_size), dtype=jnp.float32)
    beta = jnp.zeros((1, hidden_size), dtype=jnp.float32)

    lim2 = 1.0 / jnp.sqrt(hidden_size)
    w2 = jax.random.uniform(k2, (hidden_size, out_features), minval=-lim2, maxval=lim2,
                            dtype=jnp.float32)
    b2 = jax.random.uniform(kb2, (1, out_features), minval=-lim2, maxval=lim2,
                            dtype=jnp.float32)

    params = init_mlp_params(w1, b1, gamma, beta, w2, b2)   # pad/cast once, off hot path
    out = mlp_forward(x, params)
    out = jax.block_until_ready(out)

    ref = _reference(x, w1, b1, gamma, beta, w2, b2)
    assert out.shape == (batch, out_features)
    # Tolerance sized for bf16 MXU matmuls plus the bf16 storage of the pre-BN
    # activations (BN statistics themselves are computed in f32 in both paths).
    assert jnp.allclose(out, ref, atol=2e-2, rtol=2e-2), "Pallas kernel mismatch vs reference"

    print("KERNEL_OK")
</pallas_src>

<mosaic_0001>
module attributes {stable_mosaic.version = 11 : i64} {
  func.func @_phase1_kernel(%arg0: i32, %arg1: i32, %arg2: memref<16x128xf32, #tpu.memory_space<vmem>>, %arg3: memref<128x128xbf16, #tpu.memory_space<vmem>>, %arg4: memref<16x128xbf16, #tpu.memory_space<vmem>>, %arg5: memref<1x1x128xf32, #tpu.memory_space<vmem>>, %arg6: memref<1x1x128xf32, #tpu.memory_space<vmem>>) attributes {dimension_semantics = [#tpu.dimension_semantics<parallel>, #tpu.dimension_semantics<arbitrary>], iteration_bounds = array<i64: 1, 1>, scalar_prefetch = 0 : i64, scratch_operands = 0 : i64, tpu.core_type = #tpu.core_type<tc>, window_params = [{transform_indices = @transform_0, window_bounds = array<i64: 16, 128>}, {pipeline_mode = #tpu.pipeline_mode<synchronous>, transform_indices = @transform_1, window_bounds = array<i64: 128, 128>}, {transform_indices = @transform_2, window_bounds = array<i64: 16, 128>}, {transform_indices = @transform_3, window_bounds = array<i64: 1, 1, 128>}, {transform_indices = @transform_4, window_bounds = array<i64: 1, 1, 128>}]} {
    %c0_i32 = arith.constant 0 : i32
    %0 = arith.cmpi eq, %arg1, %c0_i32 : i32
    %1 = arith.extui %0 : i1 to i32
    %c0_i32_0 = arith.constant 0 : i32
    %2 = arith.cmpi ne, %1, %c0_i32_0 : i32
    scf.if %2 {
      %cst_20 = arith.constant 0.000000e+00 : f32
      %22 = vector.broadcast %cst_20 : f32 to vector<1x1x128xf32>
      %c0_21 = arith.constant 0 : index
      %c0_22 = arith.constant 0 : index
      %c0_23 = arith.constant 0 : index
      %23 = vector.load %arg5[%c0_21, %c0_22, %c0_23] : memref<1x1x128xf32, #tpu.memory_space<vmem>>, vector<1x1x128xf32>
      tpu.vector_store %arg5[%c0_21, %c0_22, %c0_23], %22 {strides = array<i32>} : memref<1x1x128xf32, #tpu.memory_space<vmem>>, vector<1x1x128xf32>,
      %cst_24 = arith.constant 0.000000e+00 : f32
      %24 = vector.broadcast %cst_24 : f32 to vector<1x1x128xf32>
      %c0_25 = arith.constant 0 : index
      %c0_26 = arith.constant 0 : index
      %c0_27 = arith.constant 0 : index
      %25 = vector.load %arg6[%c0_25, %c0_26, %c0_27] : memref<1x1x128xf32, #tpu.memory_space<vmem>>, vector<1x1x128xf32>
      tpu.vector_store %arg6[%c0_25, %c0_26, %c0_27], %24 {strides = array<i32>} : memref<1x1x128xf32, #tpu.memory_space<vmem>>, vector<1x1x128xf32>,
    } else {
    }
    %c0 = arith.constant 0 : index
    %c0_1 = arith.constant 0 : index
    %3 = vector.load %arg2[%c0, %c0_1] : memref<16x128xf32, #tpu.memory_space<vmem>>, vector<16x128xf32>
    %4 = arith.truncf %3 : vector<16x128xf32> to vector<16x128xbf16>
    %c0_2 = arith.constant 0 : index
    %c0_3 = arith.constant 0 : index
    %5 = vector.load %arg3[%c0_2, %c0_3] : memref<128x128xbf16, #tpu.memory_space<vmem>>, vector<128x128xbf16>
    %cst = arith.constant dense<0.000000e+00> : vector<16x128xf32>
    %6 = tpu.matmul %4, %5, %cst {dimension_numbers = #tpu.dot_dimension_numbers<[1], [0], [0], [1], [0, 0, 1, 1], [], []>} : vector<16x128xbf16>, vector<128x128xbf16>, vector<16x128xf32> -> vector<16x128xf32>
    %7 = arith.truncf %6 : vector<16x128xf32> to vector<16x128xbf16>
    %c0_4 = arith.constant 0 : index
    %c0_5 = arith.constant 0 : index
    %8 = vector.load %arg4[%c0_4, %c0_5] : memref<16x128xbf16, #tpu.memory_space<vmem>>, vector<16x128xbf16>
    tpu.vector_store %arg4[%c0_4, %c0_5], %7 {strides = array<i32>} : memref<16x128xbf16, #tpu.memory_space<vmem>>, vector<16x128xbf16>,
    %c0_6 = arith.constant 0 : index
    %c0_7 = arith.constant 0 : index
    %c0_8 = arith.constant 0 : index
    %9 = vector.load %arg5[%c0_6, %c0_7, %c0_8] : memref<1x1x128xf32, #tpu.memory_space<vmem>>, vector<1x1x128xf32>
    %cst_9 = arith.constant dense<0.000000e+00> : vector<128xf32>
    %10 = vector.multi_reduction <add>, %6, %cst_9 [0] : vector<16x128xf32> to vector<128xf32>
    %11 = vector.shape_cast %10 : vector<128xf32> to vector<1x128xf32>
    %12 = vector.shape_cast %11 : vector<1x128xf32> to vector<1x1x128xf32>
    %13 = arith.addf %9, %12 : vector<1x1x128xf32>
    %c0_10 = arith.constant 0 : index
    %c0_11 = arith.constant 0 : index
    %c0_12 = arith.constant 0 : index
    %14 = vector.load %arg5[%c0_10, %c0_11, %c0_12] : memref<1x1x128xf32, #tpu.memory_space<vmem>>, vector<1x1x128xf32>
    tpu.vector_store %arg5[%c0_10, %c0_11, %c0_12], %13 {strides = array<i32>} : memref<1x1x128xf32, #tpu.memory_space<vmem>>, vector<1x1x128xf32>,
    %c0_13 = arith.constant 0 : index
    %c0_14 = arith.constant 0 : index
    %c0_15 = arith.constant 0 : index
    %15 = vector.load %arg6[%c0_13, %c0_14, %c0_15] : memref<1x1x128xf32, #tpu.memory_space<vmem>>, vector<1x1x128xf32>
    %16 = arith.mulf %6, %6 : vector<16x128xf32>
    %cst_16 = arith.constant dense<0.000000e+00> : vector<128xf32>
    %17 = vector.multi_reduction <add>, %16, %cst_16 [0] : vector<16x128xf32> to vector<128xf32>
    %18 = vector.shape_cast %17 : vector<128xf32> to vector<1x128xf32>
    %19 = vector.shape_cast %18 : vector<1x128xf32> to vector<1x1x128xf32>
    %20 = arith.addf %15, %19 : vector<1x1x128xf32>
    %c0_17 = arith.constant 0 : index
    %c0_18 = arith.constant 0 : index
    %c0_19 = arith.constant 0 : index
    %21 = vector.load %arg6[%c0_17, %c0_18, %c0_19] : memref<1x1x128xf32, #tpu.memory_space<vmem>>, vector<1x1x128xf32>
    tpu.vector_store %arg6[%c0_17, %c0_18, %c0_19], %20 {strides = array<i32>} : memref<1x1x128xf32, #tpu.memory_space<vmem>>, vector<1x1x128xf32>,
    return
  }
  func.func @transform_0(%arg0: i32, %arg1: i32) -> (i32, i32) {
    %c1_i32 = arith.constant 1 : i32
    %0 = arith.muli %arg0, %c1_i32 : i32
    %1 = arith.addi %0, %arg1 : i32
    %c0_i32 = arith.constant 0 : i32
    %c0_i32_0 = arith.constant 0 : i32
    return %1, %c0_i32 : i32, i32
  }
  func.func @transform_1(%arg0: i32, %arg1: i32) -> (i32, i32) {
    %c0_i32 = arith.constant 0 : i32
    %c0_i32_0 = arith.constant 0 : i32
    %c0_i32_1 = arith.constant 0 : i32
    return %c0_i32, %c0_i32_0 : i32, i32
  }
  func.func @transform_2(%arg0: i32, %arg1: i32) -> (i32, i32) {
    %c1_i32 = arith.constant 1 : i32
    %0 = arith.muli %arg0, %c1_i32 : i32
    %1 = arith.addi %0, %arg1 : i32
    %c0_i32 = arith.constant 0 : i32
    %c0_i32_0 = arith.constant 0 : i32
    return %1, %c0_i32 : i32, i32
  }
  func.func @transform_3(%arg0: i32, %arg1: i32) -> (i32, i32, i32) {
    %c0_i32 = arith.constant 0 : i32
    %c0_i32_0 = arith.constant 0 : i32
    %c0_i32_1 = arith.constant 0 : i32
    return %arg0, %c0_i32, %c0_i32_0 : i32, i32, i32
  }
  func.func @transform_4(%arg0: i32, %arg1: i32) -> (i32, i32, i32) {
    %c0_i32 = arith.constant 0 : i32
    %c0_i32_0 = arith.constant 0 : i32
    %c0_i32_1 = arith.constant 0 : i32
    return %arg0, %c0_i32, %c0_i32_0 : i32, i32, i32
  }
}

</mosaic_0001>

<llo_original>
// kernel: tpu_custom_call.1
$region0: #{tpu_custom_call.1}
  #allocation0 [shape = 'u32[]', space=smem, size = 0x4, offset = 0x4, fixed_abs, tag = 'smem constant byte address 0x4 - core index']
  #allocation1 [shape = 'u32[144,128]{1,0:T(1,128)}', space=vmem, size = 0x12000, scoped, tag = 'internal scratch']
  %s0 = inlined_call_operand.hbm [shape: f32[16,128], index: 0, kind: input, shape index: {}]
  %s1 = inlined_call_operand.hbm [shape: bf16[128,128], index: 1, kind: input, shape index: {}]
  %s2 = inlined_call_operand.hbm [shape: bf16[16,128], index: 2, kind: output, shape index: {0}]
  %s3 = inlined_call_operand.hbm [shape: f32[1,1,128], index: 3, kind: output, shape index: {1}]
  %s4 = inlined_call_operand.hbm [shape: f32[1,1,128], index: 4, kind: output, shape index: {2}]
  %5 = xla_tuple %s2, %s3, %s4
  %s6 = sld [smem:[#allocation0]]
  $region46: #{tpu_custom_call.1} parent=0
    _
  %s8 = ssub.s32 1, %s6
  %s9 = scalar_select 0, %s8, %s6
  $region1: #{tpu_custom_call.1} parent=0
    #allocation2 [shape = 'u8[8192]{0}', space=vmem, size = 0x2000, scoped, tag = 'input window, operand 0, single buffered']
    #allocation3 [shape = 's32[1]{0}', space=sflag, size = 0x4, scoped, tag = 'scoped memory for tpu_custom_call.1']
    #allocation4 [shape = 's32[1]{0}', space=sflag, size = 0x4, scoped, tag = 'scoped memory for tpu_custom_call.1']
    #allocation5 [shape = 'u8[32768]{0}', space=vmem, size = 0x8000, scoped, tag = 'input window, operand 1, single buffered']
    #allocation6 [shape = 's32[1]{0}', space=sflag, size = 0x4, scoped, tag = 'scoped memory for tpu_custom_call.1']
    #allocation7 [shape = 'u8[4096]{0}', space=vmem, size = 0x1000, scoped, tag = 'output window, operand 0, single buffered']
    #allocation8 [shape = 'u8[512]{0}', space=vmem, size = 0x400, scoped, tag = 'output window, operand 1, single buffered']
    #allocation9 [shape = 's32[1]{0}', space=sflag, size = 0x4, scoped, tag = 'scoped memory for tpu_custom_call.1']
    #allocation10 [shape = 'u8[512]{0}', space=vmem, size = 0x400, scoped, tag = 'output window, operand 2, single buffered']
    %10 = vsyncpa [#allocation3], 0
    %11 = vsyncpa [#allocation6], 0
    %12 = vsyncpa [#allocation4], 0
    %13 = vsyncpa [#allocation9], 0
    // Predicated region
    $region2: #{tpu_custom_call.1} parent=1 // pred_check
      _
    $region3: #{tpu_custom_call.1} parent=1 // pred_check_branch
      %15 = sbr.rel (0) target = $region5
    $region4: #{tpu_custom_call.1} parent=1 // pred_region
      %s16 = sadd.s32 0, 0
      %s17 = smul.u32 2, %s16
      %s19 = ssub.s32 256, 256
      %20 = vsyncadd [#allocation3], %s19
      %s21 = smul.addr %s17, 128
      %s22 = scalar_lea.hbm %s0, %s21
      %s23 = sshll.u32 [#allocation2], 4
      %s24 = int_to_ptr.vmem [resolvable:$true] %s23
      %29 = dma.hbm_to_vmem [thread:$0]  %s22, 256, %s24, [#allocation3], 128, 128, 8
    $region5: #{tpu_custom_call.1} parent=1 // pred_fallthru
      _
    // Predicated region
    $region6: #{tpu_custom_call.1} parent=1 // pred_check
      _
    $region7: #{tpu_custom_call.1} parent=1 // pred_check_branch
      %31 = sbr.rel (0) target = $region9
    $region8: #{tpu_custom_call.1} parent=1 // pred_region
      %s33 = ssub.s32 1024, 1024
      %34 = vsyncadd [#allocation6], %s33
      %s35 = sshll.u32 [#allocation5], 4
      %s36 = int_to_ptr.vmem [resolvable:$true] %s35
      %41 = dma.hbm_to_vmem [thread:$0]  %s1, 1024, %s36, [#allocation6], 64, 64, 4
    $region9: #{tpu_custom_call.1} parent=1 // pred_fallthru
      _
    // Predicated region
    $region10: #{tpu_custom_call.1} parent=1 // pred_check
      _
    $region11: #{tpu_custom_call.1} parent=1 // pred_check_branch
      %43 = sbr.rel (0) target = $region13
    $region12: #{tpu_custom_call.1} parent=1 // pred_region
      %44 = dma.done [#allocation3], 256
    $region13: #{tpu_custom_call.1} parent=1 // pred_fallthru
      _
    // Predicated region
    $region14: #{tpu_custom_call.1} parent=1 // pred_check
      _
    $region15: #{tpu_custom_call.1} parent=1 // pred_check_branch
      %46 = sbr.rel (0) target = $region17
    $region16: #{tpu_custom_call.1} parent=1 // pred_region
      %47 = dma.done [#allocation6], 1024
    $region17: #{tpu_custom_call.1} parent=1 // pred_fallthru
      _
    %s48 = sadd.s32 0, 0
    %s49 = smul.u32 2, %s48
    %s50 = sadd.s32 0, 0
    %s51 = smul.u32 2, %s50
    %p53 = scmp.eq.s32.totalorder 0, 0
    // Predicated region
    $region18: #{tpu_custom_call.1} parent=1 // pred_check
      %p54 = pneg %p53
    $region19: #{tpu_custom_call.1} parent=1 // pred_check_branch
      %56 = sbr.rel (%p54) target = $region21
    $region20: #{tpu_custom_call.1} parent=1 // pred_region
      %57 = vst [vmem:[#allocation8] sm:$0x1] 0.0
      %58 = vst [vmem:[#allocation10] sm:$0x1] 0.0
    $region21: #{tpu_custom_call.1} parent=1 // pred_fallthru
      _
    %v59 = vld [vmem:[#allocation2] sm:$0xff]
    %v60 = vld [vmem:[#allocation2 + $0x8] sm:$0xff]
    %v61 = vpack.c.bf16 %v60, %v59
    %v62 = vld [vmem:[#allocation5] sm:$0xf]
    %v63 = vld [vmem:[#allocation5 + $0x4] sm:$0xf]
    %v64 = vld [vmem:[#allocation5 + $0x8] sm:$0xf]
    %v65 = vld [vmem:[#allocation5 + $0xc] sm:$0xf]
    %v66 = vld [vmem:[#allocation5 + $0x10] sm:$0xf]
    %v67 = vld [vmem:[#allocation5 + $0x14] sm:$0xf]
    %v68 = vld [vmem:[#allocation5 + $0x18] sm:$0xf]
    %v69 = vld [vmem:[#allocation5 + $0x1c] sm:$0xf]
    %v70 = vld [vmem:[#allocation5 + $0x20] sm:$0xf]
    %v71 = vld [vmem:[#allocation5 + $0x24] sm:$0xf]
    %v72 = vld [vmem:[#allocation5 + $0x28] sm:$0xf]
    %v73 = vld [vmem:[#allocation5 + $0x2c] sm:$0xf]
    %v74 = vld [vmem:[#allocation5 + $0x30] sm:$0xf]
    %v75 = vld [vmem:[#allocation5 + $0x34] sm:$0xf]
    %v76 = vld [vmem:[#allocation5 + $0x38] sm:$0xf]
    %v77 = vld [vmem:[#allocation5 + $0x3c] sm:$0xf]
    %v94 = vunpack.c.l.b16 %v62
    %v95 = vunpack.c.l.b16 %v63
    %v96 = vunpack.c.l.b16 %v64
    %v97 = vunpack.c.l.b16 %v65
    %v98 = vunpack.c.l.b16 %v66
    %v99 = vunpack.c.l.b16 %v67
    %v100 = vunpack.c.l.b16 %v68
    %v101 = vunpack.c.l.b16 %v69
    %v102 = vunpack.c.l.b16 %v70
    %v103 = vunpack.c.l.b16 %v71
    %v104 = vunpack.c.l.b16 %v72
    %v105 = vunpack.c.l.b16 %v73
    %v106 = vunpack.c.l.b16 %v74
    %v107 = vunpack.c.l.b16 %v75
    %v108 = vunpack.c.l.b16 %v76
    %v109 = vunpack.c.l.b16 %v77
    %v110 = vpack.c.b16 %v95, %v94
    %v111 = vpack.c.b16 %v97, %v96
    %v112 = vpack.c.b16 %v99, %v98
    %v113 = vpack.c.b16 %v101, %v100
    %v114 = vpack.c.b16 %v103, %v102
    %v115 = vpack.c.b16 %v105, %v104
    %v116 = vpack.c.b16 %v107, %v106
    %v117 = vpack.c.b16 %v109, %v108
    %126 = vmatprep.subr.bf16.mxu0 0
    %127 = vmatpush1.bf16.msra.mxu0 %v110
    %128 = vmatprep.subr.bf16.mxu0 0
    %129 = vmatpush1.bf16.msra.mxu0 %v111
    %130 = vmatprep.subr.bf16.mxu0 0
    %131 = vmatpush1.bf16.msra.mxu0 %v112
    %132 = vmatprep.subr.bf16.mxu0 0
    %133 = vmatpush1.bf16.msra.mxu0 %v113
    %134 = vmatprep.subr.bf16.mxu0 0
    %135 = vmatpush1.bf16.msra.mxu0 %v114
    %136 = vmatprep.subr.bf16.mxu0 0
    %137 = vmatpush1.bf16.msra.mxu0 %v115
    %138 = vmatprep.subr.bf16.mxu0 0
    %139 = vmatpush1.bf16.msra.mxu0 %v116
    %140 = vmatprep.subr.bf16.mxu0 0
    %141 = vmatpush1.bf16.msra.mxu0 %v117
    %142 = vmatprep.subr.bf16.mxu0 0
    %143 = vmatpush1.bf16.msra.mxu0 0
    %144 = vmatprep.subr.bf16.mxu0 0
    %145 = vmatpush1.bf16.msra.mxu0 0
    %146 = vmatprep.subr.bf16.mxu0 0
    %147 = vmatpush1.bf16.msra.mxu0 0
    %148 = vmatprep.subr.bf16.mxu0 0
    %149 = vmatpush1.bf16.msra.mxu0 0
    %150 = vmatprep.subr.bf16.mxu0 0
    %151 = vmatpush1.bf16.msra.mxu0 0
    %152 = vmatprep.subr.bf16.mxu0 0
    %153 = vmatpush1.bf16.msra.mxu0 0
    %154 = vmatprep.subr.bf16.mxu0 0
    %155 = vmatpush1.bf16.msra.mxu0 0
    %156 = vmatprep.subr.bf16.mxu0 0
    %157 = vmatpush1.bf16.msra.mxu0 0
    %158 = vmatprep.mubr.bf16.mxu0 0
    %159 = vmatmul.mubr.bf16.gmra.mrb[0].mxu0 %v61
    %v160 = vpop.f32.mrb[0].mxu0
    %v161 = vadd.f32 0.0, %v160
    %v162 = vpop.f32.mrb[0].mxu0
    %v163 = vpop.f32.mrb[0].mxu0
    %v164 = vadd.f32 0.0, %v163
    %v165 = vpop.f32.mrb[0].mxu0
    %166 = vdwg.mxu0
    %v167 = vpack.c.bf16 %v164, %v161
    %v169 = vunpack.c.l.b16 %v167
    %v170 = vunpack.c.h.b16 %v167
    %v171 = vpack.c.b16 %v169, %v169
    %v172 = vpack.c.b16 %v170, %v170
    %175 = vst [vmem:[#allocation7] sm:$0xf] %v171
    %176 = vst [vmem:[#allocation7 + $0x4] sm:$0xf] %v172
    %v177 = vld [vmem:[#allocation8] sm:$0x1]
    %v178 = vadd.f32 %v161, %v164
    %v179 = vrot.slane %v178, 4
    %v180 = vadd.f32 %v178, %v179
    %v181 = vrot.slane %v180, 2
    %v182 = vadd.f32 %v180, %v181
    %v183 = vrot.slane %v182, 1
    %v184 = vadd.f32 %v182, %v183
    %v185 = vadd.f32 %v177, %v184
    %186 = vst [vmem:[#allocation8] sm:$0x1] %v185
    %v187 = vld [vmem:[#allocation10] sm:$0x1]
    %v188 = vmul.f32 %v161, %v161
    %v189 = vmul.f32 %v164, %v164
    %v190 = vadd.f32 %v188, %v189
    %v191 = vrot.slane %v190, 4
    %v192 = vadd.f32 %v190, %v191
    %v193 = vrot.slane %v192, 2
    %v194 = vadd.f32 %v192, %v193
    %v195 = vrot.slane %v194, 1
    %v196 = vadd.f32 %v194, %v195
    %v197 = vadd.f32 %v187, %v196
    %198 = vst [vmem:[#allocation10] sm:$0x1] %v197
    // Predicated region
    $region22: #{tpu_custom_call.1} parent=1 // pred_check
      _
    $region23: #{tpu_custom_call.1} parent=1 // pred_check_branch
      %200 = sbr.rel (0) target = $region25
    $region24: #{tpu_custom_call.1} parent=1 // pred_region
      %s201 = sadd.s32 0, 0
      %s202 = smul.u32 2, %s201
      %s204 = ssub.s32 128, 128
      %205 = vsyncadd [#allocation4], %s204
      %s206 = smul.addr %s202, 64
      %s207 = scalar_lea.hbm %s2, %s206
      %s208 = sshll.u32 [#allocation7], 4
      %s209 = int_to_ptr.vmem [resolvable:$true] %s208
      %214 = dma.vmem_to_hbm [thread:$0]  %s209, 128, %s207, [#allocation4], 64, 64, 4
    $region25: #{tpu_custom_call.1} parent=1 // pred_fallthru
      _
    // Predicated region
    $region26: #{tpu_custom_call.1} parent=1 // pred_check
      _
    $region27: #{tpu_custom_call.1} parent=1 // pred_check_branch
      %216 = sbr.rel (0) target = $region29
    $region28: #{tpu_custom_call.1} parent=1 // pred_region
      %s218 = ssub.s32 16, 16
      %219 = vsyncadd [#allocation9], %s218
      %s221 = sshll.u32 [#allocation8], 4
      %s222 = int_to_ptr.vmem [resolvable:$true] %s221
      %224 = dma.vmem_to_hbm [thread:$0]  %s222, 16, %s3, [#allocation9]
    $region29: #{tpu_custom_call.1} parent=1 // pred_fallthru
      _
    // Predicated region
    $region30: #{tpu_custom_call.1} parent=1 // pred_check
      _
    $region31: #{tpu_custom_call.1} parent=1 // pred_check_branch
      %226 = sbr.rel (0) target = $region33
    $region32: #{tpu_custom_call.1} parent=1 // pred_region
      %s228 = ssub.s32 16, 16
      %229 = vsyncadd [#allocation9], %s228
      %s231 = sshll.u32 [#allocation10], 4
      %s232 = int_to_ptr.vmem [resolvable:$true] %s231
      %234 = dma.vmem_to_hbm [thread:$0]  %s232, 16, %s4, [#allocation9]
    $region33: #{tpu_custom_call.1} parent=1 // pred_fallthru
      _
    // Predicated region
    $region34: #{tpu_custom_call.1} parent=1 // pred_check
      _
    $region35: #{tpu_custom_call.1} parent=1 // pred_check_branch
      %236 = sbr.rel (0) target = $region37
    $region36: #{tpu_custom_call.1} parent=1 // pred_region
      %237 = dma.done [#allocation4], 128
    $region37: #{tpu_custom_call.1} parent=1 // pred_fallthru
      _
    // Predicated region
    $region38: #{tpu_custom_call.1} parent=1 // pred_check
      _
    $region39: #{tpu_custom_call.1} parent=1 // pred_check_branch
      %239 = sbr.rel (0) target = $region41
    $region40: #{tpu_custom_call.1} parent=1 // pred_region
      %240 = dma.done [#allocation9], 16
    $region41: #{tpu_custom_call.1} parent=1 // pred_fallthru
      _
    // Predicated region
    $region42: #{tpu_custom_call.1} parent=1 // pred_check
      _
    $region43: #{tpu_custom_call.1} parent=1 // pred_check_branch
      %242 = sbr.rel (0) target = $region45
    $region44: #{tpu_custom_call.1} parent=1 // pred_region
      %243 = dma.done [#allocation9], 16
    $region45: #{tpu_custom_call.1} parent=1 // pred_fallthru
      _
    %244 = vsyncpa [#allocation3], 1
    %245 = vsyncpa [#allocation6], 1
    %246 = vsyncpa [#allocation4], 1
    %247 = vsyncpa [#allocation9], 1

</llo_original>
